<compile_context>
chip_gen: v6e
topology: v6e:2x2x1
jax: 0.10.0
libtpu: 0.0.40
codegen_flags: <defaults>
</compile_context>

<pallas_src>
import jax
import jax.numpy as jnp
from jax.experimental import pallas as pl
from jax.experimental.pallas import tpu as pltpu


H1 = 64      # real layer-1 width
H_PAD = 128  # layer-1 width after zero padding (64 real + 64 zero units)
H2 = 128     # layers 2/3 width


def critic_kernel(x_ref,
                  w1_ref, b1_ref,
                  w2_ref, b2_ref,
                  w3_ref, b3_ref,
                  w4_ref, b4_ref,
                  o_ref):
    """Fused (Linear -> ReLU) x3 -> Linear for one batch tile (all f32)."""
    x = x_ref[...]

    h = jnp.dot(x, w1_ref[...], preferred_element_type=jnp.float32) + b1_ref[...]
    h = jnp.maximum(h, 0.0)

    h = jnp.dot(h, w2_ref[...], preferred_element_type=jnp.float32) + b2_ref[...]
    h = jnp.maximum(h, 0.0)

    h = jnp.dot(h, w3_ref[...], preferred_element_type=jnp.float32) + b3_ref[...]
    h = jnp.maximum(h, 0.0)

    # Final layer has a single output unit: VPU multiply + XLU lane reduction
    # instead of paying a full MXU pass for 1/128 of the columns.
    y = jnp.sum(h * w4_ref[...], axis=-1, keepdims=True) + b4_ref[...]

    # Narrow [tb, 1] store — no lane broadcast of the scalar output.
    o_ref[...] = y.astype(o_ref.dtype)


def _cdiv(a, m):
    return -(-a // m)


def _round_up(a, m):
    return _cdiv(a, m) * m


def critic_forward(x, params, max_tile=2048, target_steps=1):
    """x: [B, obs+act] float32 -> [B, 1] float32.

    target_steps: desired number of grid steps (use 2 on v7x so the batch
    axis shards across both TensorCores); max_tile caps VMEM per step.
    """
    batch, in_dim = x.shape
    (w1, b1), (w2, b2), (w3, b3), (w4_row, b4) = params

    # Pad batch only to a multiple of 8 sublanes; split into as few grid steps
    # as possible (each step has ~0.35us fixed overhead).
    pad8 = _round_up(batch, 8)
    n_steps = max(target_steps, _cdiv(pad8, max_tile))
    tb = _round_up(_cdiv(pad8, n_steps), 8)
    padded = tb * n_steps
    if padded != batch:
        x = jnp.pad(x, ((0, padded - batch), (0, 0)))

    grid = (n_steps,)

    flops = 2 * padded * (in_dim * H_PAD + H_PAD * H2 + H2 * H2 + H2)
    bytes_accessed = (
        (w1.size + b1.size + w2.size + b2.size
         + w3.size + b3.size + w4_row.size + b4.size) * 4   # f32 weights/biases
        + padded * in_dim * 4                                # x in
        + padded * 1 * 4                                     # narrow out
    )

    const = lambda i: (0, 0)

    out = pl.pallas_call(
        critic_kernel,
        out_shape=jax.ShapeDtypeStruct((padded, 1), jnp.float32),
        grid=grid,
        in_specs=[
            pl.BlockSpec((tb, in_dim), lambda i: (i, 0)),
            pl.BlockSpec(w1.shape, const), pl.BlockSpec(b1.shape, const),
            pl.BlockSpec(w2.shape, const), pl.BlockSpec(b2.shape, const),
            pl.BlockSpec(w3.shape, const), pl.BlockSpec(b3.shape, const),
            pl.BlockSpec(w4_row.shape, const), pl.BlockSpec(b4.shape, const),
        ],
        out_specs=pl.BlockSpec((tb, 1), lambda i: (i, 0)),
        compiler_params=pltpu.CompilerParams(
            dimension_semantics=("parallel",)),
        cost_estimate=pl.CostEstimate(
            flops=int(flops), transcendentals=0,
            bytes_accessed=int(bytes_accessed)),
    )(x, w1, b1, w2, b2, w3, b3, w4_row, b4)

    return out[:batch]


def init_linear(key, fan_in, fan_out):
    """PyTorch-style uniform init U(-1/sqrt(fan_in), 1/sqrt(fan_in)).

    Returned as [in, out] so the kernel computes x @ W (== x @ W_torch.T)."""
    kw, kb = jax.random.split(key)
    bound = 1.0 / jnp.sqrt(jnp.float32(fan_in))
    w = jax.random.uniform(kw, (fan_in, fan_out), jnp.float32, -bound, bound)
    b = jax.random.uniform(kb, (1, fan_out), jnp.float32, -bound, bound)
    return w, b


def init_critic_params(key, observation_space, action_space):
    """Returns f32 params with layer 1 zero-padded 64 -> 128 units.

    ReLU(x @ 0 + 0) = 0 and the corresponding rows of w2 are zero, so the
    padded units contribute exactly nothing; math matches the PyTorch net."""
    k1, k2, k3, k4 = jax.random.split(key, 4)
    in_dim = observation_space + action_space

    w1, b1 = init_linear(k1, in_dim, H1)   # [in, 64],  [1, 64]
    w2, b2 = init_linear(k2, H1, H2)       # [64, 128], [1, 128]
    w3, b3 = init_linear(k3, H2, H2)       # [128,128], [1, 128]
    w4, b4 = init_linear(k4, H2, 1)        # [128, 1],  [1, 1]

    w1p = jnp.zeros((in_dim, H_PAD), jnp.float32).at[:, :H1].set(w1)
    b1p = jnp.zeros((1, H_PAD), jnp.float32).at[:, :H1].set(b1)
    w2p = jnp.zeros((H_PAD, H2), jnp.float32).at[:H1, :].set(w2)
    w4_row = w4.T  # [1, 128]

    return ((w1p, b1p), (w2p, b2), (w3, b3), (w4_row, b4))


def critic_reference(x, params):
    """Pure-JAX f32 reference of the PyTorch forward."""
    (w1, b1), (w2, b2), (w3, b3), (w4r, b4) = params
    hp = jax.lax.Precision.HIGHEST
    h = jnp.maximum(jnp.dot(x, w1, precision=hp) + b1, 0.0)
    h = jnp.maximum(jnp.dot(h, w2, precision=hp) + b2, 0.0)
    h = jnp.maximum(jnp.dot(h, w3, precision=hp) + b3, 0.0)
    return jnp.sum(h * w4r, axis=-1, keepdims=True) + b4


if __name__ == "__main__":
    observation_space = 12
    action_space = 4
    batch = 8

    key = jax.random.PRNGKey(0)
    k_params, k_x = jax.random.split(key)

    params = init_critic_params(k_params, observation_space, action_space)

    # x is the concatenated (state, action) vector fed to the critic.
    x = jax.random.normal(
        k_x, (batch, observation_space + action_space), jnp.float32)

    out = critic_forward(x, params)
    out = jax.block_until_ready(out)

    ref = critic_reference(x, params)
    assert out.shape == (batch, 1), out.shape
    assert jnp.allclose(out, ref, atol=2e-3, rtol=2e-3), "mismatch vs reference"

    print("KERNEL_OK")
</pallas_src>

<mosaic_0001>
module attributes {stable_mosaic.version = 11 : i64} {
  func.func @critic_kernel(%arg0: i32, %arg1: memref<8x16xf32, #tpu.memory_space<vmem>>, %arg2: memref<16x128xf32, #tpu.memory_space<vmem>>, %arg3: memref<1x128xf32, #tpu.memory_space<vmem>>, %arg4: memref<128x128xf32, #tpu.memory_space<vmem>>, %arg5: memref<1x128xf32, #tpu.memory_space<vmem>>, %arg6: memref<128x128xf32, #tpu.memory_space<vmem>>, %arg7: memref<1x128xf32, #tpu.memory_space<vmem>>, %arg8: memref<1x128xf32, #tpu.memory_space<vmem>>, %arg9: memref<1x1xf32, #tpu.memory_space<vmem>>, %arg10: memref<8x1xf32, #tpu.memory_space<vmem>>) attributes {dimension_semantics = [#tpu.dimension_semantics<parallel>], iteration_bounds = array<i64: 1>, scalar_prefetch = 0 : i64, scratch_operands = 0 : i64, tpu.core_type = #tpu.core_type<tc>, window_params = [{transform_indices = @transform_0, window_bounds = array<i64: 8, 16>}, {pipeline_mode = #tpu.pipeline_mode<synchronous>, transform_indices = @transform_1, window_bounds = array<i64: 16, 128>}, {pipeline_mode = #tpu.pipeline_mode<synchronous>, transform_indices = @transform_2, window_bounds = array<i64: 1, 128>}, {pipeline_mode = #tpu.pipeline_mode<synchronous>, transform_indices = @transform_3, window_bounds = array<i64: 128, 128>}, {pipeline_mode = #tpu.pipeline_mode<synchronous>, transform_indices = @transform_4, window_bounds = array<i64: 1, 128>}, {pipeline_mode = #tpu.pipeline_mode<synchronous>, transform_indices = @transform_5, window_bounds = array<i64: 128, 128>}, {pipeline_mode = #tpu.pipeline_mode<synchronous>, transform_indices = @transform_6, window_bounds = array<i64: 1, 128>}, {pipeline_mode = #tpu.pipeline_mode<synchronous>, transform_indices = @transform_7, window_bounds = array<i64: 1, 128>}, {pipeline_mode = #tpu.pipeline_mode<synchronous>, transform_indices = @transform_8, window_bounds = array<i64: 1, 1>}, {transform_indices = @transform_9, window_bounds = array<i64: 8, 1>}]} {
    %c0 = arith.constant 0 : index
    %c0_0 = arith.constant 0 : index
    %0 = vector.load %arg1[%c0, %c0_0] : memref<8x16xf32, #tpu.memory_space<vmem>>, vector<8x16xf32>
    %c0_1 = arith.constant 0 : index
    %c0_2 = arith.constant 0 : index
    %1 = vector.load %arg2[%c0_1, %c0_2] : memref<16x128xf32, #tpu.memory_space<vmem>>, vector<16x128xf32>
    %cst = arith.constant dense<0.000000e+00> : vector<8x128xf32>
    %2 = tpu.matmul %0, %1, %cst {dimension_numbers = #tpu.dot_dimension_numbers<[1], [0], [0], [1], [0, 0, 1, 1], [], []>} : vector<8x16xf32>, vector<16x128xf32>, vector<8x128xf32> -> vector<8x128xf32>
    %c0_3 = arith.constant 0 : index
    %c0_4 = arith.constant 0 : index
    %3 = vector.load %arg3[%c0_3, %c0_4] : memref<1x128xf32, #tpu.memory_space<vmem>>, vector<1x128xf32>
    %4 = vector.broadcast %3 : vector<1x128xf32> to vector<8x128xf32>
    %5 = arith.addf %2, %4 : vector<8x128xf32>
    %cst_5 = arith.constant 0.000000e+00 : f32
    %6 = vector.broadcast %cst_5 : f32 to vector<8x128xf32>
    %7 = arith.maximumf %5, %6 : vector<8x128xf32>
    %c0_6 = arith.constant 0 : index
    %c0_7 = arith.constant 0 : index
    %8 = vector.load %arg4[%c0_6, %c0_7] : memref<128x128xf32, #tpu.memory_space<vmem>>, vector<128x128xf32>
    %cst_8 = arith.constant dense<0.000000e+00> : vector<8x128xf32>
    %9 = tpu.matmul %7, %8, %cst_8 {dimension_numbers = #tpu.dot_dimension_numbers<[1], [0], [0], [1], [0, 0, 1, 1], [], []>} : vector<8x128xf32>, vector<128x128xf32>, vector<8x128xf32> -> vector<8x128xf32>
    %c0_9 = arith.constant 0 : index
    %c0_10 = arith.constant 0 : index
    %10 = vector.load %arg5[%c0_9, %c0_10] : memref<1x128xf32, #tpu.memory_space<vmem>>, vector<1x128xf32>
    %11 = vector.broadcast %10 : vector<1x128xf32> to vector<8x128xf32>
    %12 = arith.addf %9, %11 : vector<8x128xf32>
    %cst_11 = arith.constant 0.000000e+00 : f32
    %13 = vector.broadcast %cst_11 : f32 to vector<8x128xf32>
    %14 = arith.maximumf %12, %13 : vector<8x128xf32>
    %c0_12 = arith.constant 0 : index
    %c0_13 = arith.constant 0 : index
    %15 = vector.load %arg6[%c0_12, %c0_13] : memref<128x128xf32, #tpu.memory_space<vmem>>, vector<128x128xf32>
    %cst_14 = arith.constant dense<0.000000e+00> : vector<8x128xf32>
    %16 = tpu.matmul %14, %15, %cst_14 {dimension_numbers = #tpu.dot_dimension_numbers<[1], [0], [0], [1], [0, 0, 1, 1], [], []>} : vector<8x128xf32>, vector<128x128xf32>, vector<8x128xf32> -> vector<8x128xf32>
    %c0_15 = arith.constant 0 : index
    %c0_16 = arith.constant 0 : index
    %17 = vector.load %arg7[%c0_15, %c0_16] : memref<1x128xf32, #tpu.memory_space<vmem>>, vector<1x128xf32>
    %18 = vector.broadcast %17 : vector<1x128xf32> to vector<8x128xf32>
    %19 = arith.addf %16, %18 : vector<8x128xf32>
    %cst_17 = arith.constant 0.000000e+00 : f32
    %20 = vector.broadcast %cst_17 : f32 to vector<8x128xf32>
    %21 = arith.maximumf %19, %20 : vector<8x128xf32>
    %c0_18 = arith.constant 0 : index
    %c0_19 = arith.constant 0 : index
    %22 = vector.load %arg8[%c0_18, %c0_19] : memref<1x128xf32, #tpu.memory_space<vmem>>, vector<1x128xf32>
    %23 = vector.broadcast %22 : vector<1x128xf32> to vector<8x128xf32>
    %24 = arith.mulf %21, %23 : vector<8x128xf32>
    %cst_20 = arith.constant dense<0.000000e+00> : vector<8xf32>
    %25 = vector.multi_reduction <add>, %24, %cst_20 [1] : vector<8x128xf32> to vector<8xf32>
    %26 = vector.shape_cast %25 : vector<8xf32> to vector<8x1xf32>
    %c0_21 = arith.constant 0 : index
    %c0_22 = arith.constant 0 : index
    %27 = vector.load %arg9[%c0_21, %c0_22] : memref<1x1xf32, #tpu.memory_space<vmem>>, vector<1x1xf32>
    %28 = vector.broadcast %27 : vector<1x1xf32> to vector<8x1xf32>
    %29 = arith.addf %26, %28 : vector<8x1xf32>
    %c0_23 = arith.constant 0 : index
    %c0_24 = arith.constant 0 : index
    %30 = vector.load %arg10[%c0_23, %c0_24] : memref<8x1xf32, #tpu.memory_space<vmem>>, vector<8x1xf32>
    tpu.vector_store %arg10[%c0_23, %c0_24], %29 {strides = array<i32>} : memref<8x1xf32, #tpu.memory_space<vmem>>, vector<8x1xf32>,
    return
  }
  func.func @transform_0(%arg0: i32) -> (i32, i32) {
    %c0_i32 = arith.constant 0 : i32
    %c0_i32_0 = arith.constant 0 : i32
    return %arg0, %c0_i32 : i32, i32
  }
  func.func @transform_1(%arg0: i32) -> (i32, i32) {
    %c0_i32 = arith.constant 0 : i32
    %c0_i32_0 = arith.constant 0 : i32
    %c0_i32_1 = arith.constant 0 : i32
    return %c0_i32, %c0_i32_0 : i32, i32
  }
  func.func @transform_2(%arg0: i32) -> (i32, i32) {
    %c0_i32 = arith.constant 0 : i32
    %c0_i32_0 = arith.constant 0 : i32
    %c0_i32_1 = arith.constant 0 : i32
    return %c0_i32, %c0_i32_0 : i32, i32
  }
  func.func @transform_3(%arg0: i32) -> (i32, i32) {
    %c0_i32 = arith.constant 0 : i32
    %c0_i32_0 = arith.constant 0 : i32
    %c0_i32_1 = arith.constant 0 : i32
    return %c0_i32, %c0_i32_0 : i32, i32
  }
  func.func @transform_4(%arg0: i32) -> (i32, i32) {
    %c0_i32 = arith.constant 0 : i32
    %c0_i32_0 = arith.constant 0 : i32
    %c0_i32_1 = arith.constant 0 : i32
    return %c0_i32, %c0_i32_0 : i32, i32
  }
  func.func @transform_5(%arg0: i32) -> (i32, i32) {
    %c0_i32 = arith.constant 0 : i32
    %c0_i32_0 = arith.constant 0 : i32
    %c0_i32_1 = arith.constant 0 : i32
    return %c0_i32, %c0_i32_0 : i32, i32
  }
  func.func @transform_6(%arg0: i32) -> (i32, i32) {
    %c0_i32 = arith.constant 0 : i32
    %c0_i32_0 = arith.constant 0 : i32
    %c0_i32_1 = arith.constant 0 : i32
    return %c0_i32, %c0_i32_0 : i32, i32
  }
  func.func @transform_7(%arg0: i32) -> (i32, i32) {
    %c0_i32 = arith.constant 0 : i32
    %c0_i32_0 = arith.constant 0 : i32
    %c0_i32_1 = arith.constant 0 : i32
    return %c0_i32, %c0_i32_0 : i32, i32
  }
  func.func @transform_8(%arg0: i32) -> (i32, i32) {
    %c0_i32 = arith.constant 0 : i32
    %c0_i32_0 = arith.constant 0 : i32
    %c0_i32_1 = arith.constant 0 : i32
    return %c0_i32, %c0_i32_0 : i32, i32
  }
  func.func @transform_9(%arg0: i32) -> (i32, i32) {
    %c0_i32 = arith.constant 0 : i32
    %c0_i32_0 = arith.constant 0 : i32
    return %arg0, %c0_i32 : i32, i32
  }
}

</mosaic_0001>

<llo_original>
// kernel: tpu_custom_call.1
$region0: #{tpu_custom_call.1}
  #allocation0 [shape = 'u32[]', space=smem, size = 0x4, offset = 0x4, fixed_abs, tag = 'smem constant byte address 0x4 - core index']
  #allocation1 [shape = 'u32[144,128]{1,0:T(1,128)}', space=vmem, size = 0x12000, scoped, tag = 'internal scratch']
  #allocation2 [shape = 'f32[1,1]{1,0:T(1,128)S(1)}', space=vmem, size = 0x200, scoped, tag = 'scoped memory for tpu_custom_call.1']
  %s0 = inlined_call_operand.hbm [shape: f32[8,16], index: 0, kind: input, shape index: {}]
  %s1 = inlined_call_operand.hbm [shape: f32[16,128], index: 1, kind: input, shape index: {}]
  %s2 = inlined_call_operand.vmem [shape: f32[1,128], index: 2, kind: input, shape index: {}]
  %s3 = inlined_call_operand.hbm [shape: f32[128,128], index: 3, kind: input, shape index: {}]
  %s4 = inlined_call_operand.vmem [shape: f32[1,128], index: 4, kind: input, shape index: {}]
  %s5 = inlined_call_operand.hbm [shape: f32[128,128], index: 5, kind: input, shape index: {}]
  %s6 = inlined_call_operand.vmem [shape: f32[1,128], index: 6, kind: input, shape index: {}]
  %s7 = inlined_call_operand.vmem [shape: f32[1,128], index: 7, kind: input, shape index: {}]
  %s8 = inlined_call_operand.<no memory space> [shape: f32[1,1], index: 8, kind: input, shape index: {}]
  %s9 = inlined_call_operand.vmem [shape: f32[8,1], index: 9, kind: output, shape index: {}]
  %s10 = sld [smem:[#allocation0]]
  $region62: #{tpu_custom_call.1} parent=0
    _
  %s12 = ssub.s32 1, %s10
  %s13 = scalar_select 0, %s12, %s10
  %v14 = vstv %s8
  %15 = vst [vmem:[#allocation2] sm:$0x1] %v14
  $region1: #{tpu_custom_call.1} parent=0
    #allocation3 [shape = 'u8[4096]{0}', space=vmem, size = 0x1000, scoped, tag = 'input window, operand 0, single buffered']
    #allocation4 [shape = 's32[1]{0}', space=sflag, size = 0x4, scoped, tag = 'scoped memory for tpu_custom_call.1']
    #allocation5 [shape = 'u8[8192]{0}', space=vmem, size = 0x2000, scoped, tag = 'input window, operand 1, single buffered']
    #allocation6 [shape = 's32[1]{0}', space=sflag, size = 0x4, scoped, tag = 'scoped memory for tpu_custom_call.1']
    #allocation7 [shape = 'u8[65536]{0}', space=vmem, size = 0x10000, scoped, tag = 'input window, operand 3, single buffered']
    #allocation8 [shape = 'u8[65536]{0}', space=vmem, size = 0x10000, scoped, tag = 'input window, operand 5, single buffered']
    #allocation9 [shape = 's32[1]{0}', space=sflag, size = 0x4, scoped, tag = 'scoped memory for tpu_custom_call.1']
    %16 = vsyncpa [#allocation4], 0
    %17 = vsyncpa [#allocation6], 0
    %18 = vsyncpa [#allocation9], 0
    // Predicated region
    $region2: #{tpu_custom_call.1} parent=1 // pred_check
      _
    $region3: #{tpu_custom_call.1} parent=1 // pred_check_branch
      %20 = sbr.rel (0) target = $region5
    $region4: #{tpu_custom_call.1} parent=1 // pred_region
      %s22 = ssub.s32 128, 128
      %23 = vsyncadd [#allocation4], %s22
      %s25 = sshll.u32 [#allocation3], 4
      %s26 = int_to_ptr.vmem [resolvable:$true] %s25
      %28 = dma.hbm_to_vmem [thread:$0]  %s0, 128, %s26, [#allocation4]
    $region5: #{tpu_custom_call.1} parent=1 // pred_fallthru
      _
    // Predicated region
    $region6: #{tpu_custom_call.1} parent=1 // pred_check
      _
    $region7: #{tpu_custom_call.1} parent=1 // pred_check_branch
      %30 = sbr.rel (0) target = $region9
    $region8: #{tpu_custom_call.1} parent=1 // pred_region
      %s32 = ssub.s32 256, 256
      %33 = vsyncadd [#allocation6], %s32
      %s34 = sshll.u32 [#allocation5], 4
      %s35 = int_to_ptr.vmem [resolvable:$true] %s34
      %40 = dma.hbm_to_vmem [thread:$0]  %s1, 256, %s35, [#allocation6], 128, 128, 8
    $region9: #{tpu_custom_call.1} parent=1 // pred_fallthru
      _
    // Predicated region
    $region10: #{tpu_custom_call.1} parent=1 // pred_check
      _
    $region11: #{tpu_custom_call.1} parent=1 // pred_check_branch
      %42 = sbr.rel (0) target = $region13
    $region12: #{tpu_custom_call.1} parent=1 // pred_region
      _
    $region13: #{tpu_custom_call.1} parent=1 // pred_fallthru
      _
    // Predicated region
    $region14: #{tpu_custom_call.1} parent=1 // pred_check
      _
    $region15: #{tpu_custom_call.1} parent=1 // pred_check_branch
      %44 = sbr.rel (0) target = $region17
    $region16: #{tpu_custom_call.1} parent=1 // pred_region
      %s46 = ssub.s32 2048, 2048
      %47 = vsyncadd [#allocation6], %s46
      %s48 = sshll.u32 [#allocation7], 4
      %s49 = int_to_ptr.vmem [resolvable:$true] %s48
      %54 = dma.hbm_to_vmem [thread:$0]  %s3, 2048, %s49, [#allocation6], 128, 128, 8
    $region17: #{tpu_custom_call.1} parent=1 // pred_fallthru
      _
    // Predicated region
    $region18: #{tpu_custom_call.1} parent=1 // pred_check
      _
    $region19: #{tpu_custom_call.1} parent=1 // pred_check_branch
      %56 = sbr.rel (0) target = $region21
    $region20: #{tpu_custom_call.1} parent=1 // pred_region
      _
    $region21: #{tpu_custom_call.1} parent=1 // pred_fallthru
      _
    // Predicated region
    $region22: #{tpu_custom_call.1} parent=1 // pred_check
      _
    $region23: #{tpu_custom_call.1} parent=1 // pred_check_branch
      %58 = sbr.rel (0) target = $region25
    $region24: #{tpu_custom_call.1} parent=1 // pred_region
      %s60 = ssub.s32 2048, 2048
      %61 = vsyncadd [#allocation9], %s60
      %s62 = sshll.u32 [#allocation8], 4
      %s63 = int_to_ptr.vmem [resolvable:$true] %s62
      %68 = dma.hbm_to_vmem [thread:$0]  %s5, 2048, %s63, [#allocation9], 128, 128, 8
    $region25: #{tpu_custom_call.1} parent=1 // pred_fallthru
      _
    // Predicated region
    $region26: #{tpu_custom_call.1} parent=1 // pred_check
      _
    $region27: #{tpu_custom_call.1} parent=1 // pred_check_branch
      %70 = sbr.rel (0) target = $region29
    $region28: #{tpu_custom_call.1} parent=1 // pred_region
      _
    $region29: #{tpu_custom_call.1} parent=1 // pred_fallthru
      _
    // Predicated region
    $region30: #{tpu_custom_call.1} parent=1 // pred_check
      _
    $region31: #{tpu_custom_call.1} parent=1 // pred_check_branch
      %72 = sbr.rel (0) target = $region33
    $region32: #{tpu_custom_call.1} parent=1 // pred_region
      _
    $region33: #{tpu_custom_call.1} parent=1 // pred_fallthru
      _
    // Predicated region
    $region34: #{tpu_custom_call.1} parent=1 // pred_check
      _
    $region35: #{tpu_custom_call.1} parent=1 // pred_check_branch
      %74 = sbr.rel (0) target = $region37
    $region36: #{tpu_custom_call.1} parent=1 // pred_region
      _
    $region37: #{tpu_custom_call.1} parent=1 // pred_fallthru
      _
    // Predicated region
    $region38: #{tpu_custom_call.1} parent=1 // pred_check
      _
    $region39: #{tpu_custom_call.1} parent=1 // pred_check_branch
      %76 = sbr.rel (0) target = $region41
    $region40: #{tpu_custom_call.1} parent=1 // pred_region
      %77 = dma.done [#allocation4], 128
    $region41: #{tpu_custom_call.1} parent=1 // pred_fallthru
      _
    // Predicated region
    $region42: #{tpu_custom_call.1} parent=1 // pred_check
      _
    $region43: #{tpu_custom_call.1} parent=1 // pred_check_branch
      %79 = sbr.rel (0) target = $region45
    $region44: #{tpu_custom_call.1} parent=1 // pred_region
      %80 = dma.done [#allocation6], 256
    $region45: #{tpu_custom_call.1} parent=1 // pred_fallthru
      _
    // Predicated region
    $region46: #{tpu_custom_call.1} parent=1 // pred_check
      _
    $region47: #{tpu_custom_call.1} parent=1 // pred_check_branch
      %82 = sbr.rel (0) target = $region49
    $region48: #{tpu_custom_call.1} parent=1 // pred_region
      %83 = dma.done [#allocation6], 2048
    $region49: #{tpu_custom_call.1} parent=1 // pred_fallthru
      _
    // Predicated region
    $region50: #{tpu_custom_call.1} parent=1 // pred_check
      _
    $region51: #{tpu_custom_call.1} parent=1 // pred_check_branch
      %85 = sbr.rel (0) target = $region53
    $region52: #{tpu_custom_call.1} parent=1 // pred_region
      %86 = dma.done [#allocation9], 2048
    $region53: #{tpu_custom_call.1} parent=1 // pred_fallthru
      _
    %v87 = vld [vmem:[#allocation3] sm:$0xff]
    %v88 = vld [vmem:[#allocation5] sm:$0xff]
    %v89 = vld [vmem:[#allocation5 + $0x8] sm:$0xff]
    %v90 = vld [vmem:[%s2] sm:$0x1]
    %v92 = vlaneseq
    %v93 = vshrl.u32 %v92, 7
    %v94 = vsub.s32 0, %v93
    %v95 = vrot.slane %v90, %v94
    %vm97 = vcmask 130048
    %v99 = vsel %vm97, %v87, 0
    %101 = vmatprep.subr.mxu0 0.0
    %102 = vmatpush1.msra.mxu0 0.0
    %103 = vmatprep.subr.mxu0 0.0
    %104 = vmatpush1.msra.mxu0 0.0
    %105 = vmatprep.subr.mxu0 0.0
    %106 = vmatpush1.msra.mxu0 0.0
    %107 = vmatprep.subr.mxu0 0.0
    %108 = vmatpush1.msra.mxu0 0.0
    %109 = vmatprep.subr.mxu0 0.0
    %110 = vmatpush1.msra.mxu0 0.0
    %111 = vmatprep.subr.mxu0 0.0
    %112 = vmatpush1.msra.mxu0 0.0
    %113 = vmatprep.subr.mxu0 0.0
    %114 = vmatpush1.msra.mxu0 0.0
    %115 = vmatprep.subr.mxu0 0.0
    %116 = vmatpush1.msra.mxu0 0.0
    %117 = vmatprep.subr.mxu0 0.0
    %118 = vmatpush1.msra.mxu0 0.0
    %119 = vmatprep.subr.mxu0 0.0
    %120 = vmatpush1.msra.mxu0 0.0
    %121 = vmatprep.subr.mxu0 0.0
    %122 = vmatpush1.msra.mxu0 0.0
    %123 = vmatprep.subr.mxu0 0.0
    %124 = vmatpush1.msra.mxu0 0.0
    %125 = vmatprep.subr.mxu0 0.0
    %126 = vmatpush1.msra.mxu0 0.0
    %127 = vmatprep.subr.mxu0 0.0
    %128 = vmatpush1.msra.mxu0 0.0
    %129 = vmatprep.subr.mxu0 0.0
    %130 = vmatpush1.msra.mxu0 %v89
    %131 = vmatprep.subr.mxu0 0.0
    %132 = vmatpush1.msra.mxu0 %v88
    %133 = vmatprep.subr.mxu0 0.0
    %134 = vmatpush2.msra.mxu0 0.0
    %135 = vmatprep.subr.mxu0 0.0
    %136 = vmatpush2.msra.mxu0 0.0
    %137 = vmatprep.subr.mxu0 0.0
    %138 = vmatpush2.msra.mxu0 0.0
    %139 = vmatprep.subr.mxu0 0.0
    %140 = vmatpush2.msra.mxu0 0.0
    %141 = vmatprep.subr.mxu0 0.0
    %142 = vmatpush2.msra.mxu0 0.0
    %143 = vmatprep.subr.mxu0 0.0
    %144 = vmatpush2.msra.mxu0 0.0
    %145 = vmatprep.subr.mxu0 0.0
    %146 = vmatpush2.msra.mxu0 0.0
    %147 = vmatprep.subr.mxu0 0.0
    %148 = vmatpush2.msra.mxu0 0.0
    %149 = vmatprep.subr.mxu0 0.0
    %150 = vmatpush2.msra.mxu0 0.0
    %151 = vmatprep.subr.mxu0 0.0
    %152 = vmatpush2.msra.mxu0 0.0
    %153 = vmatprep.subr.mxu0 0.0
    %154 = vmatpush2.msra.mxu0 0.0
    %155 = vmatprep.subr.mxu0 0.0
    %156 = vmatpush2.msra.mxu0 0.0
    %157 = vmatprep.subr.mxu0 0.0
    %158 = vmatpush2.msra.mxu0 0.0
    %159 = vmatprep.subr.mxu0 0.0
    %160 = vmatpush2.msra.mxu0 0.0
    %161 = vmatprep.subr.mxu0 0.0
    %162 = vmatpush2.msra.mxu0 0.0
    %163 = vmatprep.subr.mxu0 0.0
    %164 = vmatpush2.msra.mxu0 0.0
    %165 = vmatprep.mubr.f32.mxu0 0.0
    %166 = vmatmul.mubr.f32.gmra.mxu0 %v99
    %v167 = vpop.f32.mrf.mxu0
    %v168 = vadd.f32 %v95, %v167
    %v169 = vpop.f32.mrf.mxu0
    %170 = vdwg.mxu0
    %v171 = vmax.f32 %v168, 0.0
    %v172 = vld [vmem:[#allocation7] sm:$0xff]
    %v173 = vld [vmem:[#allocation7 + $0x8] sm:$0xff]
    %v174 = vld [vmem:[#allocation7 + $0x10] sm:$0xff]
    %v175 = vld [vmem:[#allocation7 + $0x18] sm:$0xff]
    %v176 = vld [vmem:[#allocation7 + $0x20] sm:$0xff]
    %v177 = vld [vmem:[#allocation7 + $0x28] sm:$0xff]
    %v178 = vld [vmem:[#allocation7 + $0x30] sm:$0xff]
    %v179 = vld [vmem:[#allocation7 + $0x38] sm:$0xff]
    %v180 = vld [vmem:[#allocation7 + $0x40] sm:$0xff]
    %v181 = vld [vmem:[#allocation7 + $0x48] sm:$0xff]
    %v182 = vld [vmem:[#allocation7 + $0x50] sm:$0xff]
    %v183 = vld [vmem:[#allocation7 + $0x58] sm:$0xff]
    %v184 = vld [vmem:[#allocation7 + $0x60] sm:$0xff]
    %v185 = vld [vmem:[#allocation7 + $0x68] sm:$0xff]
    %v186 = vld [vmem:[#allocation7 + $0x70] sm:$0xff]
    %v187 = vld [vmem:[#allocation7 + $0x78] sm:$0xff]
    %v188 = vld [vmem:[%s4] sm:$0x1]
    %v190 = vlaneseq
    %v191 = vshrl.u32 %v190, 7
    %v192 = vsub.s32 0, %v191
    %v193 = vrot.slane %v188, %v192
    %195 = vmatprep.subr.mxu0 0.0
    %196 = vmatpush1.msra.mxu0 %v187
    %197 = vmatprep.subr.mxu0 0.0
    %198 = vmatpush1.msra.mxu0 %v186
    %199 = vmatprep.subr.mxu0 0.0
    %200 = vmatpush1.msra.mxu0 %v185
    %201 = vmatprep.subr.mxu0 0.0
    %202 = vmatpush1.msra.mxu0 %v184
    %203 = vmatprep.subr.mxu0 0.0
    %204 = vmatpush1.msra.mxu0 %v183
    %205 = vmatprep.subr.mxu0 0.0
    %206 = vmatpush1.msra.mxu0 %v182
    %207 = vmatprep.subr.mxu0 0.0
    %208 = vmatpush1.msra.mxu0 %v181
    %209 = vmatprep.subr.mxu0 0.0
    %210 = vmatpush1.msra.mxu0 %v180
    %211 = vmatprep.subr.mxu0 0.0
    %212 = vmatpush1.msra.mxu0 %v179
    %213 = vmatprep.subr.mxu0 0.0
    %214 = vmatpush1.msra.mxu0 %v178
    %215 = vmatprep.subr.mxu0 0.0
    %216 = vmatpush1.msra.mxu0 %v177
    %217 = vmatprep.subr.mxu0 0.0
    %218 = vmatpush1.msra.mxu0 %v176
    %219 = vmatprep.subr.mxu0 0.0
    %220 = vmatpush1.msra.mxu0 %v175
    %221 = vmatprep.subr.mxu0 0.0
    %222 = vmatpush1.msra.mxu0 %v174
    %223 = vmatprep.subr.mxu0 0.0
    %224 = vmatpush1.msra.mxu0 %v173
    %225 = vmatprep.subr.mxu0 0.0
    %226 = vmatpush1.msra.mxu0 %v172
    %227 = vmatprep.subr.mxu0 0.0
    %228 = vmatpush2.msra.mxu0 0.0
    %229 = vmatprep.subr.mxu0 0.0
    %230 = vmatpush2.msra.mxu0 0.0
    %231 = vmatprep.subr.mxu0 0.0
    %232 = vmatpush2.msra.mxu0 0.0
    %233 = vmatprep.subr.mxu0 0.0
    %234 = vmatpush2.msra.mxu0 0.0
    %235 = vmatprep.subr.mxu0 0.0
    %236 = vmatpush2.msra.mxu0 0.0
    %237 = vmatprep.subr.mxu0 0.0
    %238 = vmatpush2.msra.mxu0 0.0
    %239 = vmatprep.subr.mxu0 0.0
    %240 = vmatpush2.msra.mxu0 0.0
    %241 = vmatprep.subr.mxu0 0.0
    %242 = vmatpush2.msra.mxu0 0.0
    %243 = vmatprep.subr.mxu0 0.0
    %244 = vmatpush2.msra.mxu0 0.0
    %245 = vmatprep.subr.mxu0 0.0
    %246 = vmatpush2.msra.mxu0 0.0
    %247 = vmatprep.subr.mxu0 0.0
    %248 = vmatpush2.msra.mxu0 0.0
    %249 = vmatprep.subr.mxu0 0.0
    %250 = vmatpush2.msra.mxu0 0.0
    %251 = vmatprep.subr.mxu0 0.0
    %252 = vmatpush2.msra.mxu0 0.0
    %253 = vmatprep.subr.mxu0 0.0
    %254 = vmatpush2.msra.mxu0 0.0
    %255 = vmatprep.subr.mxu0 0.0
    %256 = vmatpush2.msra.mxu0 0.0
    %257 = vmatprep.subr.mxu0 0.0
    %258 = vmatpush2.msra.mxu0 0.0
    %259 = vmatprep.mubr.f32.mxu0 0.0
    %260 = vmatmul.mubr.f32.gmra.mxu0 %v171
    %v261 = vpop.f32.mrf.mxu0
    %v262 = vadd.f32 %v193, %v261
    %v263 = vpop.f32.mrf.mxu0
    %264 = vdwg.mxu0
    %v265 = vmax.f32 %v262, 0.0
    %v266 = vld [vmem:[#allocation8] sm:$0xff]
    %v267 = vld [vmem:[#allocation8 + $0x8] sm:$0xff]
    %v268 = vld [vmem:[#allocation8 + $0x10] sm:$0xff]
    %v269 = vld [vmem:[#allocation8 + $0x18] sm:$0xff]
    %v270 = vld [vmem:[#allocation8 + $0x20] sm:$0xff]
    %v271 = vld [vmem:[#allocation8 + $0x28] sm:$0xff]
    %v272 = vld [vmem:[#allocation8 + $0x30] sm:$0xff]
    %v273 = vld [vmem:[#allocation8 + $0x38] sm:$0xff]
    %v274 = vld [vmem:[#allocation8 + $0x40] sm:$0xff]
    %v275 = vld [vmem:[#allocation8 + $0x48] sm:$0xff]
    %v276 = vld [vmem:[#allocation8 + $0x50] sm:$0xff]
    %v277 = vld [vmem:[#allocation8 + $0x58] sm:$0xff]
    %v278 = vld [vmem:[#allocation8 + $0x60] sm:$0xff]
    %v279 = vld [vmem:[#allocation8 + $0x68] sm:$0xff]
    %v280 = vld [vmem:[#allocation8 + $0x70] sm:$0xff]
    %v281 = vld [vmem:[#allocation8 + $0x78] sm:$0xff]
    %v282 = vld [vmem:[%s6] sm:$0x1]
    %v284 = vlaneseq
    %v285 = vshrl.u32 %v284, 7
    %v286 = vsub.s32 0, %v285
    %v287 = vrot.slane %v282, %v286
    %289 = vmatprep.subr.mxu0 0.0
    %290 = vmatpush1.msra.mxu0 %v281
    %291 = vmatprep.subr.mxu0 0.0
    %292 = vmatpush1.msra.mxu0 %v280
    %293 = vmatprep.subr.mxu0 0.0
    %294 = vmatpush1.msra.mxu0 %v279
    %295 = vmatprep.subr.mxu0 0.0
    %296 = vmatpush1.msra.mxu0 %v278
    %297 = vmatprep.subr.mxu0 0.0
    %298 = vmatpush1.msra.mxu0 %v277
    %299 = vmatprep.subr.mxu0 0.0
    %300 = vmatpush1.msra.mxu0 %v276
    %301 = vmatprep.subr.mxu0 0.0
    %302 = vmatpush1.msra.mxu0 %v275
    %303 = vmatprep.subr.mxu0 0.0
    %304 = vmatpush1.msra.mxu0 %v274
    %305 = vmatprep.subr.mxu0 0.0
    %306 = vmatpush1.msra.mxu0 %v273
    %307 = vmatprep.subr.mxu0 0.0
    %308 = vmatpush1.msra.mxu0 %v272
    %309 = vmatprep.subr.mxu0 0.0
    %310 = vmatpush1.msra.mxu0 %v271
    %311 = vmatprep.subr.mxu0 0.0
    %312 = vmatpush1.msra.mxu0 %v270
    %313 = vmatprep.subr.mxu0 0.0
    %314 = vmatpush1.msra.mxu0 %v269
    %315 = vmatprep.subr.mxu0 0.0
    %316 = vmatpush1.msra.mxu0 %v268
    %317 = vmatprep.subr.mxu0 0.0
    %318 = vmatpush1.msra.mxu0 %v267
    %319 = vmatprep.subr.mxu0 0.0
    %320 = vmatpush1.msra.mxu0 %v266
    %321 = vmatprep.subr.mxu0 0.0
    %322 = vmatpush2.msra.mxu0 0.0
    %323 = vmatprep.subr.mxu0 0.0
    %324 = vmatpush2.msra.mxu0 0.0
    %325 = vmatprep.subr.mxu0 0.0
    %326 = vmatpush2.msra.mxu0 0.0
    %327 = vmatprep.subr.mxu0 0.0
    %328 = vmatpush2.msra.mxu0 0.0
    %329 = vmatprep.subr.mxu0 0.0
    %330 = vmatpush2.msra.mxu0 0.0
    %331 = vmatprep.subr.mxu0 0.0
    %332 = vmatpush2.msra.mxu0 0.0
    %333 = vmatprep.subr.mxu0 0.0
    %334 = vmatpush2.msra.mxu0 0.0
    %335 = vmatprep.subr.mxu0 0.0
    %336 = vmatpush2.msra.mxu0 0.0
    %337 = vmatprep.subr.mxu0 0.0
    %338 = vmatpush2.msra.mxu0 0.0
    %339 = vmatprep.subr.mxu0 0.0
    %340 = vmatpush2.msra.mxu0 0.0
    %341 = vmatprep.subr.mxu0 0.0
    %342 = vmatpush2.msra.mxu0 0.0
    %343 = vmatprep.subr.mxu0 0.0
    %344 = vmatpush2.msra.mxu0 0.0
    %345 = vmatprep.subr.mxu0 0.0
    %346 = vmatpush2.msra.mxu0 0.0
    %347 = vmatprep.subr.mxu0 0.0
    %348 = vmatpush2.msra.mxu0 0.0
    %349 = vmatprep.subr.mxu0 0.0
    %350 = vmatpush2.msra.mxu0 0.0
    %351 = vmatprep.subr.mxu0 0.0
    %352 = vmatpush2.msra.mxu0 0.0
    %353 = vmatprep.mubr.f32.mxu0 0.0
    %354 = vmatmul.mubr.f32.gmra.mxu0 %v265
    %v355 = vpop.f32.mrf.mxu0
    %v356 = vadd.f32 %v287, %v355
    %v357 = vpop.f32.mrf.mxu0
    %358 = vdwg.mxu0
    %v359 = vmax.f32 %v356, 0.0
    %v360 = vld [vmem:[%s7] sm:$0x1]
    %v362 = vlaneseq
    %v363 = vshrl.u32 %v362, 7
    %v364 = vsub.s32 0, %v363
    %v365 = vrot.slane %v360, %v364
    %v367 = vmul.f32 %v359, %v365
    %368 = vadd.xlane.f32.xlu0 %v367
    %v369 = vpop.xlane.xlu0 %368
    %v370 = vld [vmem:[#allocation2] sm:$0x1]
    %v372 = vlaneseq
    %v373 = vshrl.u32 %v372, 7
    %v374 = vsub.s32 0, %v373
    %v375 = vrot.slane %v370, %v374
    %v377 = vadd.f32 %v369, %v375
    %vm378 = vcmask 7168
    %379 = vst.msk [vmem:[%s9] sm:$0xff] %vm378, %v377
    // Predicated region
    $region54: #{tpu_custom_call.1} parent=1 // pred_check
      _
    $region55: #{tpu_custom_call.1} parent=1 // pred_check_branch
      %381 = sbr.rel (0) target = $region57
    $region56: #{tpu_custom_call.1} parent=1 // pred_region
      _
    $region57: #{tpu_custom_call.1} parent=1 // pred_fallthru
      _
    // Predicated region
    $region58: #{tpu_custom_call.1} parent=1 // pred_check
      _
    $region59: #{tpu_custom_call.1} parent=1 // pred_check_branch
      %383 = sbr.rel (0) target = $region61
    $region60: #{tpu_custom_call.1} parent=1 // pred_region
      _
    $region61: #{tpu_custom_call.1} parent=1 // pred_fallthru
      _
    %384 = vsyncpa [#allocation4], 1
    %385 = vsyncpa [#allocation6], 1
    %386 = vsyncpa [#allocation9], 1

</llo_original>
